<compile_context>
chip_gen: v7x
topology: tpu7x:2x2x1
jax: 0.10.0
libtpu: 0.0.40
codegen_flags: <defaults>
</compile_context>

<pallas_src>
import functools

import jax
import jax.numpy as jnp
from jax import lax
from jax.experimental import pallas as pl
from jax.experimental.pallas import tpu as pltpu


def attention_kernel(x_ref, w_ref, b_ref, c_ref, out_ref, *, matmul_dtype=None):
    # x_ref:   (TB, T, H)  a tile of TB batch elements of rnn_outputs
    # w_ref:   (H, H)      attention_fc weight in torch Linear layout (out, in)
    # b_ref:   (1, H)      attention_fc bias
    # c_ref:   (1, H)      context vector
    # out_ref: (TB, H)     pooled outputs s for this batch tile
    TB, T, H = x_ref.shape

    x = x_ref[...]                                   # (TB, T, H)
    x2d = x.reshape(TB * T, H)                       # fuse batch+time for one MXU call

    # Optional reduced-precision MXU inputs (bf16 on v6e/v7x); accumulate f32.
    lhs = x2d if matmul_dtype is None else x2d.astype(matmul_dtype)
    rhs = w_ref[...] if matmul_dtype is None else w_ref[...].astype(matmul_dtype)

    # u = tanh(x @ W^T + b): contract x's H with dim 1 (the "in" dim) of the
    # torch-layout weight, so no transpose is needed anywhere.
    u2d = jnp.tanh(
        lax.dot_general(
            lhs, rhs,
            dimension_numbers=(((1,), (1,)), ((), ())),
            preferred_element_type=jnp.float32,
        )
        + b_ref[...]
    )                                                # (TB*T, H), f32

    # attn_scores = u @ context_vector, kept lane-dense: (TB, T) with T on lanes.
    scores = jnp.sum((u2d * c_ref[...]).reshape(TB, T, H), axis=-1)   # (TB, T)

    # softmax over the sequence axis (dim=1 in the torch module) -> lane reduce.
    m = jnp.max(scores, axis=-1, keepdims=True)                       # (TB, 1)
    e = jnp.exp(scores - m)                                           # (TB, T)
    denom = jnp.sum(e, axis=-1, keepdims=True)                        # (TB, 1)
    r = pl.reciprocal(denom, approx=True)        # EUP vrcp (free slot)
    r = r * (2.0 - denom * r)                    # one Newton step -> near-exact
    attn_w = e * r                                                    # (TB, T)

    # s = sum_t rnn_outputs * attn_weights  -> (TB, H)
    # For small/medium T this VPU multiply + sublane reduce is cheap.
    # TODO(synk): for large T (>~256) move this contraction onto the MXU
    # (per-batch (1, T) @ (T, H)) to free the VALU/XLU slots.
    s = jnp.sum(x.astype(jnp.float32) * attn_w[:, :, None], axis=1)   # (TB, H)
    out_ref[...] = s.astype(out_ref.dtype)


def attention_forward(rnn_outputs, w, b, context, *, tb=8, matmul_dtype=None):
    """rnn_outputs: (B, T, H); w: (H_out, H_in) torch-Linear layout;
    b: (H,); context: (H,). Returns (B, H)."""
    B, T, H = rnn_outputs.shape

    # Pad the batch up to a multiple of the batch tile so every grid step sees
    # a full, sublane-dense (tb, H) output block.  Padded rows are all-zero
    # (softmax of equal scores -> finite weights, weighted sum of zeros = 0)
    # and are sliced off below.
    pad = (-B) % tb
    x = jnp.pad(rnn_outputs, ((0, pad), (0, 0), (0, 0))) if pad else rnn_outputs
    Bp = B + pad

    b2 = b.reshape(1, H)
    c2 = context.reshape(1, H)

    kernel = functools.partial(attention_kernel, matmul_dtype=matmul_dtype)

    out = pl.pallas_call(
        kernel,
        out_shape=jax.ShapeDtypeStruct((Bp, H), rnn_outputs.dtype),
        grid_spec=pltpu.PrefetchScalarGridSpec(
            num_scalar_prefetch=0,
            grid=(Bp // tb,),
            in_specs=[
                # Batch tile of the activations.
                pl.BlockSpec((tb, T, H), lambda i: (i, 0, 0)),
                # Grid-invariant parameters (full arrays, constant index_map).
                # NOTE: for large H, single-buffer the weight with
                # pipeline_mode=pl.Buffered(1) to halve its VMEM footprint
                # (matters on v7x's 64 MiB VMEM).
                pl.BlockSpec((H, H), lambda i: (0, 0)),
                pl.BlockSpec((1, H), lambda i: (0, 0)),
                pl.BlockSpec((1, H), lambda i: (0, 0)),
            ],
            out_specs=pl.BlockSpec((tb, H), lambda i: (i, 0)),
        ),
        compiler_params=pltpu.CompilerParams(
            # Batch-tile axis is independent -> shard across TensorCores
            # (v7x megacore) when the grid has >= 2 steps.
            dimension_semantics=("parallel",),
        ),
    )(x, w, b2, c2)

    return out[:B]


def attention_ref(rnn_outputs, w, b, context):
    u = jnp.tanh(jnp.einsum("bth,oh->bto", rnn_outputs, w) + b)
    scores = jnp.einsum("bth,h->bt", u, context)
    attn_w = jax.nn.softmax(scores, axis=1)[..., None]
    return jnp.sum(rnn_outputs * attn_w, axis=1)


if __name__ == "__main__":
    B, T, H = 16, 8, 32          # small shapes; B=16 -> 2 parallel grid steps
    key = jax.random.PRNGKey(0)
    kx, kw, kb, kc = jax.random.split(key, 4)

    rnn_outputs = jax.random.normal(kx, (B, T, H), dtype=jnp.float32)
    # deterministic synthetic parameters (shapes from nn.Linear(H, H) + param(H))
    w = jax.random.normal(kw, (H, H), dtype=jnp.float32) * 0.1
    b = jax.random.normal(kb, (H,), dtype=jnp.float32) * 0.1
    context = jax.random.normal(kc, (H,), dtype=jnp.float32)

    # f32 everywhere (safe on v5e); on v6e/v7x pass matmul_dtype=jnp.bfloat16
    # for ~2x MXU rate with f32 accumulation.
    out = attention_forward(rnn_outputs, w, b, context, tb=8, matmul_dtype=None)
    out = jax.block_until_ready(out)

    ref = attention_ref(rnn_outputs, w, b, context)
    assert out.shape == (B, H)
    assert jnp.allclose(out, ref, atol=1e-5, rtol=1e-5)
    print("KERNEL_OK")
</pallas_src>

<mosaic_0001>
module attributes {stable_mosaic.version = 11 : i64} {
  func.func @attention_kernel(%arg0: i32, %arg1: memref<8x8x32xf32, #tpu.memory_space<vmem>>, %arg2: memref<32x32xf32, #tpu.memory_space<vmem>>, %arg3: memref<1x32xf32, #tpu.memory_space<vmem>>, %arg4: memref<1x32xf32, #tpu.memory_space<vmem>>, %arg5: memref<8x32xf32, #tpu.memory_space<vmem>>) attributes {dimension_semantics = [#tpu.dimension_semantics<parallel>], iteration_bounds = array<i64: 2>, scalar_prefetch = 0 : i64, scratch_operands = 0 : i64, tpu.core_type = #tpu.core_type<tc>, window_params = [{transform_indices = @transform_0, window_bounds = array<i64: 8, 8, 32>}, {pipeline_mode = #tpu.pipeline_mode<synchronous>, transform_indices = @transform_1, window_bounds = array<i64: 32, 32>}, {pipeline_mode = #tpu.pipeline_mode<synchronous>, transform_indices = @transform_2, window_bounds = array<i64: 1, 32>}, {pipeline_mode = #tpu.pipeline_mode<synchronous>, transform_indices = @transform_3, window_bounds = array<i64: 1, 32>}, {transform_indices = @transform_4, window_bounds = array<i64: 8, 32>}]} {
    %c0 = arith.constant 0 : index
    %c0_0 = arith.constant 0 : index
    %c0_1 = arith.constant 0 : index
    %0 = vector.load %arg1[%c0, %c0_0, %c0_1] : memref<8x8x32xf32, #tpu.memory_space<vmem>>, vector<8x8x32xf32>
    %1 = vector.shape_cast %0 : vector<8x8x32xf32> to vector<64x32xf32>
    %c0_2 = arith.constant 0 : index
    %c0_3 = arith.constant 0 : index
    %2 = vector.load %arg2[%c0_2, %c0_3] : memref<32x32xf32, #tpu.memory_space<vmem>>, vector<32x32xf32>
    %cst = arith.constant dense<0.000000e+00> : vector<64x32xf32>
    %3 = tpu.matmul %1, %2, %cst {dimension_numbers = #tpu.dot_dimension_numbers<[1], [1], [0], [0], [0, 0, 1, 0], [], []>} : vector<64x32xf32>, vector<32x32xf32>, vector<64x32xf32> -> vector<64x32xf32>
    %c0_4 = arith.constant 0 : index
    %c0_5 = arith.constant 0 : index
    %4 = vector.load %arg3[%c0_4, %c0_5] : memref<1x32xf32, #tpu.memory_space<vmem>>, vector<1x32xf32>
    %5 = vector.broadcast %4 : vector<1x32xf32> to vector<64x32xf32>
    %6 = arith.addf %3, %5 : vector<64x32xf32>
    %7 = math.tanh %6 : vector<64x32xf32>
    %c0_6 = arith.constant 0 : index
    %c0_7 = arith.constant 0 : index
    %8 = vector.load %arg4[%c0_6, %c0_7] : memref<1x32xf32, #tpu.memory_space<vmem>>, vector<1x32xf32>
    %9 = vector.broadcast %8 : vector<1x32xf32> to vector<64x32xf32>
    %10 = arith.mulf %7, %9 : vector<64x32xf32>
    %11 = vector.shape_cast %10 : vector<64x32xf32> to vector<8x8x32xf32>
    %cst_8 = arith.constant dense<0.000000e+00> : vector<8x8xf32>
    %12 = vector.multi_reduction <add>, %11, %cst_8 [2] : vector<8x8x32xf32> to vector<8x8xf32>
    %cst_9 = arith.constant dense<0xFF800000> : vector<8xf32>
    %13 = vector.multi_reduction <maximumf>, %12, %cst_9 [1] : vector<8x8xf32> to vector<8xf32>
    %14 = vector.shape_cast %13 : vector<8xf32> to vector<8x1xf32>
    %15 = vector.broadcast %14 : vector<8x1xf32> to vector<8x8xf32>
    %16 = arith.subf %12, %15 : vector<8x8xf32>
    %17 = math.exp %16 : vector<8x8xf32>
    %cst_10 = arith.constant dense<0.000000e+00> : vector<8xf32>
    %18 = vector.multi_reduction <add>, %17, %cst_10 [1] : vector<8x8xf32> to vector<8xf32>
    %19 = vector.shape_cast %18 : vector<8xf32> to vector<8x1xf32>
    %20 = tpu.reciprocal %19 {approx = true} : vector<8x1xf32> -> vector<8x1xf32>
    %21 = arith.mulf %19, %20 : vector<8x1xf32>
    %cst_11 = arith.constant 2.000000e+00 : f32
    %22 = vector.broadcast %cst_11 : f32 to vector<8x1xf32>
    %23 = arith.subf %22, %21 : vector<8x1xf32>
    %24 = arith.mulf %20, %23 : vector<8x1xf32>
    %25 = vector.broadcast %24 : vector<8x1xf32> to vector<8x8xf32>
    %26 = arith.mulf %17, %25 : vector<8x8xf32>
    %27 = vector.shape_cast %26 : vector<8x8xf32> to vector<8x8x1xf32>
    %28 = vector.broadcast %27 : vector<8x8x1xf32> to vector<8x8x32xf32>
    %29 = arith.mulf %0, %28 : vector<8x8x32xf32>
    %cst_12 = arith.constant dense<0.000000e+00> : vector<8x32xf32>
    %30 = vector.multi_reduction <add>, %29, %cst_12 [1] : vector<8x8x32xf32> to vector<8x32xf32>
    %c0_13 = arith.constant 0 : index
    %c0_14 = arith.constant 0 : index
    %31 = vector.load %arg5[%c0_13, %c0_14] : memref<8x32xf32, #tpu.memory_space<vmem>>, vector<8x32xf32>
    tpu.vector_store %arg5[%c0_13, %c0_14], %30 {strides = array<i32>} : memref<8x32xf32, #tpu.memory_space<vmem>>, vector<8x32xf32>,
    return
  }
  func.func @transform_0(%arg0: i32) -> (i32, i32, i32) {
    %c0_i32 = arith.constant 0 : i32
    %c0_i32_0 = arith.constant 0 : i32
    %c0_i32_1 = arith.constant 0 : i32
    return %arg0, %c0_i32, %c0_i32_0 : i32, i32, i32
  }
  func.func @transform_1(%arg0: i32) -> (i32, i32) {
    %c0_i32 = arith.constant 0 : i32
    %c0_i32_0 = arith.constant 0 : i32
    %c0_i32_1 = arith.constant 0 : i32
    return %c0_i32, %c0_i32_0 : i32, i32
  }
  func.func @transform_2(%arg0: i32) -> (i32, i32) {
    %c0_i32 = arith.constant 0 : i32
    %c0_i32_0 = arith.constant 0 : i32
    %c0_i32_1 = arith.constant 0 : i32
    return %c0_i32, %c0_i32_0 : i32, i32
  }
  func.func @transform_3(%arg0: i32) -> (i32, i32) {
    %c0_i32 = arith.constant 0 : i32
    %c0_i32_0 = arith.constant 0 : i32
    %c0_i32_1 = arith.constant 0 : i32
    return %c0_i32, %c0_i32_0 : i32, i32
  }
  func.func @transform_4(%arg0: i32) -> (i32, i32) {
    %c0_i32 = arith.constant 0 : i32
    %c0_i32_0 = arith.constant 0 : i32
    return %arg0, %c0_i32 : i32, i32
  }
}

</mosaic_0001>

<llo_original>
// kernel: tpu_custom_call.1
$region0: #{tpu_custom_call.1}
  #allocation0 [shape = 'u32[]', space=smem, size = 0x4, offset = 0x4, fixed_abs, tag = 'smem constant byte address 0x4 - core index']
  #allocation1 [shape = 'u32[144,128]{1,0:T(1,128)}', space=vmem, size = 0x12000, scoped, tag = 'internal scratch']
  %s0 = inlined_call_operand.hbm [shape: f32[16,8,32], index: 0, kind: input, shape index: {}]
  %s1 = inlined_call_operand.hbm [shape: f32[32,32], index: 1, kind: input, shape index: {}]
  %s2 = inlined_call_operand.vmem [shape: f32[1,32], index: 2, kind: input, shape index: {}]
  %s3 = inlined_call_operand.vmem [shape: f32[1,32], index: 3, kind: input, shape index: {}]
  %s4 = inlined_call_operand.hbm [shape: f32[16,32], index: 4, kind: output, shape index: {}]
  %s5 = sld [smem:[#allocation0]]
  $region57: #{tpu_custom_call.1} parent=0
    _
  %s7 = ssub.s32 1, %s5
  %s8 = scalar_select 0, %s7, %s5
  $region1: #{tpu_custom_call.1} parent=0
    #allocation2 [shape = 'u8[65536]{0}', space=vmem, size = 0x10000, scoped, tag = 'input window, operand 0']
    #allocation3 [shape = 's32[2]{0}', space=sflag, size = 0x8, scoped, tag = 'scoped memory for tpu_custom_call.1']
    #allocation4 [shape = 's32[2]{0}', space=sflag, size = 0x8, scoped, tag = 'scoped memory for tpu_custom_call.1']
    #allocation5 [shape = 'u8[16384]{0}', space=vmem, size = 0x4000, scoped, tag = 'input window, operand 1, single buffered']
    #allocation6 [shape = 's32[1]{0}', space=sflag, size = 0x4, scoped, tag = 'scoped memory for tpu_custom_call.1']
    #allocation7 [shape = 'u8[8192]{0}', space=vmem, size = 0x2000, scoped, tag = 'output window, operand 0']
    %9 = vsyncpa [#allocation3], 0
    %s10 = scalar_lea.sflag [#allocation3], 1
    %11 = vsyncpa %s10, 0
    %12 = vsyncpa [#allocation6], 0
    %13 = vsyncpa [#allocation4], 0
    %s14 = scalar_lea.sflag [#allocation4], 1
    %15 = vsyncpa %s14, 0
    loop: start=0, step=1, limit=4
    $region2: #{tpu_custom_call.1} parent=1 // loop_pre_header
      _
    $region3: #{tpu_custom_call.1} parent=1 // loop_header
      %s17 = sphi 0, %s21
      %p18 = scmp.ge.s32.totalorder %s17, 4
      %s27 = sphi 0, %s29
      %s30 = sphi 0, %s27
      %s31 = sphi 0, %s30
      %s47 = sphi 0, %s31
      %s51 = sphi 0, %s51
      %s53 = sphi 0, %s51
      %s54 = sphi 0, %s53
      %s68 = sphi 0, %s54
      %s72 = sphi 0, %s72
      %s74 = sphi 0, %s72
      %s75 = sphi 0, %s74
      %s89 = sphi 0, %s75
      %s93 = sphi 0, %s93
      %s95 = sphi 0, %s93
      %s96 = sphi 0, %s95
      %s110 = sphi 0, %s96
      %s116 = sphi 0, %s118
      %s119 = sphi 0, %s116
      %s120 = sphi 0, %s119
      %s136 = sphi 0, %s120
    $region4: #{tpu_custom_call.1} parent=1 // loop_header_branch
      %20 = sbr.rel (%p18) target = $region8
    $region5: #{tpu_custom_call.1} parent=1 // loop_body
      %s22 = ssub.s32 %s17, 1
      %s23 = ssub.s32 %s17, 2
      %s24 = sadd.s32 %s17, 1
      %s25 = ssub.s32 %s17, %s24
      %p26 = scmp.eq.s32.totalorder %s25, 0
      %s28 = sadd.s32 %s27, 1
      %s29 = scalar_select %p26, %s27, %s28
      %p32 = pneg %p26
      %p33 = scmp.eq.s32.totalorder %s17, 1
      %p34 = por %p32, %p33
      %p35 = scmp.ne.s32.totalorder %s27, %s30
      %p36 = scmp.eq.s32.totalorder %s17, 0
      %p37 = por %p35, %p36
      %p38 = scmp.ne.s32.totalorder %s27, %s30
      %p39 = scmp.eq.s32.totalorder %s22, 1
      %p40 = por %p38, %p39
      %p41 = scmp.ne.s32.totalorder %s30, %s31
      %p42 = scmp.eq.s32.totalorder %s22, 0
      %p43 = por %p41, %p42
      %p44 = scmp.ne.s32.totalorder %s30, %s31
      %p45 = scmp.eq.s32.totalorder %s23, 1
      %p46 = por %p44, %p45
      %p48 = scmp.ne.s32.totalorder %s31, %s47
      %p49 = scmp.eq.s32.totalorder %s23, 0
      %p50 = por %p48, %p49
      %s52 = sadd.s32 %s51, 1
      %p55 = scmp.eq.s32.totalorder %s17, 1
      %p56 = scmp.ne.s32.totalorder %s51, %s53
      %p57 = scmp.eq.s32.totalorder %s17, 0
      %p58 = por %p56, %p57
      %p59 = scmp.ne.s32.totalorder %s51, %s53
      %p60 = scmp.eq.s32.totalorder %s22, 1
      %p61 = por %p59, %p60
      %p62 = scmp.ne.s32.totalorder %s53, %s54
      %p63 = scmp.eq.s32.totalorder %s22, 0
      %p64 = por %p62, %p63
      %p65 = scmp.ne.s32.totalorder %s53, %s54
      %p66 = scmp.eq.s32.totalorder %s23, 1
      %p67 = por %p65, %p66
      %p69 = scmp.ne.s32.totalorder %s54, %s68
      %p70 = scmp.eq.s32.totalorder %s23, 0
      %p71 = por %p69, %p70
      %s73 = sadd.s32 %s72, 1
      %p76 = scmp.eq.s32.totalorder %s17, 1
      %p77 = scmp.ne.s32.totalorder %s72, %s74
      %p78 = scmp.eq.s32.totalorder %s17, 0
      %p79 = por %p77, %p78
      %p80 = scmp.ne.s32.totalorder %s72, %s74
      %p81 = scmp.eq.s32.totalorder %s22, 1
      %p82 = por %p80, %p81
      %p83 = scmp.ne.s32.totalorder %s74, %s75
      %p84 = scmp.eq.s32.totalorder %s22, 0
      %p85 = por %p83, %p84
      %p86 = scmp.ne.s32.totalorder %s74, %s75
      %p87 = scmp.eq.s32.totalorder %s23, 1
      %p88 = por %p86, %p87
      %p90 = scmp.ne.s32.totalorder %s75, %s89
      %p91 = scmp.eq.s32.totalorder %s23, 0
      %p92 = por %p90, %p91
      %s94 = sadd.s32 %s93, 1
      %p97 = scmp.eq.s32.totalorder %s17, 1
      %p98 = scmp.ne.s32.totalorder %s93, %s95
      %p99 = scmp.eq.s32.totalorder %s17, 0
      %p100 = por %p98, %p99
      %p101 = scmp.ne.s32.totalorder %s93, %s95
      %p102 = scmp.eq.s32.totalorder %s22, 1
      %p103 = por %p101, %p102
      %p104 = scmp.ne.s32.totalorder %s95, %s96
      %p105 = scmp.eq.s32.totalorder %s22, 0
      %p106 = por %p104, %p105
      %p107 = scmp.ne.s32.totalorder %s95, %s96
      %p108 = scmp.eq.s32.totalorder %s23, 1
      %p109 = por %p107, %p108
      %p111 = scmp.ne.s32.totalorder %s96, %s110
      %p112 = scmp.eq.s32.totalorder %s23, 0
      %p113 = por %p111, %p112
      %s114 = ssub.s32 %s17, %s24
      %p115 = scmp.eq.s32.totalorder %s114, 0
      %s117 = sadd.s32 %s116, 1
      %s118 = scalar_select %p115, %s116, %s117
      %p121 = pneg %p115
      %p122 = scmp.eq.s32.totalorder %s17, 1
      %p123 = por %p121, %p122
      %p124 = scmp.ne.s32.totalorder %s116, %s119
      %p125 = scmp.eq.s32.totalorder %s17, 0
      %p126 = por %p124, %p125
      %p127 = scmp.ne.s32.totalorder %s116, %s119
      %p128 = scmp.eq.s32.totalorder %s22, 1
      %p129 = por %p127, %p128
      %p130 = scmp.ne.s32.totalorder %s119, %s120
      %p131 = scmp.eq.s32.totalorder %s22, 0
      %p132 = por %p130, %p131
      %p133 = scmp.ne.s32.totalorder %s119, %s120
      %p134 = scmp.eq.s32.totalorder %s23, 1
      %p135 = por %p133, %p134
      %p137 = scmp.ne.s32.totalorder %s120, %s136
      %p138 = scmp.eq.s32.totalorder %s23, 0
      %p139 = por %p137, %p138
      %p140 = scmp.le.s32.totalorder 1, %s17
      %p141 = scmp.lt.s32.totalorder %s17, 3
      %p142 = pnand %p140, %p141
      %p143 = pneg %p142
      // Predicated region
      $region9: #{tpu_custom_call.1} parent=5 // pred_check
        _
      $region10: #{tpu_custom_call.1} parent=5 // pred_check_branch
        %145 = sbr.rel (%p142) target = $region12
      $region11: #{tpu_custom_call.1} parent=5 // pred_region
        %s146 = ssub.s32 %s17, 1
        // Predicated region
        $region13: #{tpu_custom_call.1} parent=11 // pred_check
          %p147 = pneg %p64
        $region14: #{tpu_custom_call.1} parent=11 // pred_check_branch
          %149 = sbr.rel (%p147) target = $region16
        $region15: #{tpu_custom_call.1} parent=11 // pred_region
          %s151 = ssub.s32 512, 512
          %152 = vsyncadd [#allocation6], %s151
          %s153 = sshll.u32 [#allocation5], 4
          %s154 = int_to_ptr.vmem [resolvable:$true] %s153
          %159 = dma.hbm_to_vmem [thread:$0]  %s1, 512, %s154, [#allocation6], 128, 128, 8
        $region16: #{tpu_custom_call.1} parent=11 // pred_fallthru
          _
        // Predicated region
        $region17: #{tpu_custom_call.1} parent=11 // pred_check
          %p160 = pneg %p85
        $region18: #{tpu_custom_call.1} parent=11 // pred_check_branch
          %162 = sbr.rel (%p160) target = $region20
        $region19: #{tpu_custom_call.1} parent=11 // pred_region
          _
        $region20: #{tpu_custom_call.1} parent=11 // pred_fallthru
          _
        // Predicated region
        $region21: #{tpu_custom_call.1} parent=11 // pred_check
          %p163 = pneg %p106
        $region22: #{tpu_custom_call.1} parent=11 // pred_check_branch
          %165 = sbr.rel (%p163) target = $region24
        $region23: #{tpu_custom_call.1} parent=11 // pred_region
          _
        $region24: #{tpu_custom_call.1} parent=11 // pred_fallthru
          _
      $region12: #{tpu_custom_call.1} parent=5 // pred_fallthru
        _
      %p166 = scmp.lt.s32.totalorder %s17, 2
      // Predicated region
      $region25: #{tpu_custom_call.1} parent=5 // pred_check
        %p167 = pneg %p166
      $region26: #{tpu_custom_call.1} parent=5 // pred_check_branch
        %169 = sbr.rel (%p167) target = $region28
      $region27: #{tpu_custom_call.1} parent=5 // pred_region
        // Predicated region
        $region29: #{tpu_custom_call.1} parent=27 // pred_check
          %p170 = pneg %p37
        $region30: #{tpu_custom_call.1} parent=27 // pred_check_branch
          %172 = sbr.rel (%p170) target = $region32
        $region31: #{tpu_custom_call.1} parent=27 // pred_region
          %s173 = sand.u32 %s27, 1
          %s174 = scalar_lea.sflag [#allocation3], %s173
          %s175 = sand.u32 %s27, 1
          %s176 = smul.addr %s175, 64
          %s177 = scalar_lea.vmem [#allocation2], %s176
          %s178 = smul.u32 8, %s17
          %s180 = ssub.s32 1024, 1024
          %181 = vsyncadd %s174, %s180
          %s182 = smul.addr %s178, 128
          %s183 = scalar_lea.hbm %s0, %s182
          %s184 = sshll.u32 %s177, 4
          %s185 = int_to_ptr.vmem [resolvable:$true] %s184
          %190 = dma.hbm_to_vmem [thread:$0]  %s183, 1024, %s185, %s174, 128, 128, 8
        $region32: #{tpu_custom_call.1} parent=27 // pred_fallthru
          _
      $region28: #{tpu_custom_call.1} parent=5 // pred_fallthru
        _
      %p191 = scmp.le.s32.totalorder 1, %s17
      %p192 = scmp.lt.s32.totalorder %s17, 3
      %p193 = pnand %p191, %p192
      %p194 = pneg %p193
      // Predicated region
      $region33: #{tpu_custom_call.1} parent=5 // pred_check
        _
      $region34: #{tpu_custom_call.1} parent=5 // pred_check_branch
        %196 = sbr.rel (%p193) target = $region36
      $region35: #{tpu_custom_call.1} parent=5 // pred_region
        %s197 = ssub.s32 %s17, 1
        %s198 = sand.u32 %s30, 1
        %s199 = scalar_lea.sflag [#allocation3], %s198
        %s200 = sand.u32 %s30, 1
        %s201 = smul.addr %s200, 64
        %s202 = scalar_lea.vmem [#allocation2], %s201
        // Predicated region
        $region37: #{tpu_custom_call.1} parent=35 // pred_check
          %p203 = pneg %p43
        $region38: #{tpu_custom_call.1} parent=35 // pred_check_branch
          %205 = sbr.rel (%p203) target = $region40
        $region39: #{tpu_custom_call.1} parent=35 // pred_region
          %206 = dma.done %s199, 1024
        $region40: #{tpu_custom_call.1} parent=35 // pred_fallthru
          _
        // Predicated region
        $region41: #{tpu_custom_call.1} parent=35 // pred_check
          %p207 = pneg %p64
        $region42: #{tpu_custom_call.1} parent=35 // pred_check_branch
          %209 = sbr.rel (%p207) target = $region44
        $region43: #{tpu_custom_call.1} parent=35 // pred_region
          %210 = dma.done [#allocation6], 512
        $region44: #{tpu_custom_call.1} parent=35 // pred_fallthru
          _
        %s211 = sand.u32 %s30, 1
        %s212 = scalar_lea.sflag [#allocation3], %s211
        %s213 = sand.u32 %s30, 1
        %s214 = smul.addr %s213, 64
        %s215 = scalar_lea.vmem [#allocation2], %s214
        %p216 = pneg %p43
        %p217 = pneg %p40
        %p218 = pneg %p64
        %p219 = pneg %p61
        %p220 = pneg %p85
        %p221 = pneg %p82
        %p222 = pneg %p106
        %p223 = pneg %p103
        %p224 = pneg %p132
        %p225 = pneg %p129
        %s226 = sand.u32 %s119, 1
        %s227 = scalar_lea.sflag [#allocation4], %s226
        %s228 = sand.u32 %s119, 1
        %s229 = smul.addr %s228, 8
        %s230 = scalar_lea.vmem [#allocation7], %s229
        %s231 = smul.u32 8, %s22
        %v232 = vld [vmem:[%s202] sm:$0xff]
        %v233 = vld [vmem:[%s202 + $0x8] sm:$0xff]
        %v234 = vld [vmem:[%s202 + $0x10] sm:$0xff]
        %v235 = vld [vmem:[%s202 + $0x18] sm:$0xff]
        %v236 = vld [vmem:[%s202 + $0x20] sm:$0xff]
        %v237 = vld [vmem:[%s202 + $0x28] sm:$0xff]
        %v238 = vld [vmem:[%s202 + $0x30] sm:$0xff]
        %v239 = vld [vmem:[%s202 + $0x38] sm:$0xff]
        %v240 = vld [vmem:[#allocation5] sm:$0xff]
        %v241 = vld [vmem:[#allocation5 + $0x8] sm:$0xff]
        %v242 = vld [vmem:[#allocation5 + $0x10] sm:$0xff]
        %v243 = vld [vmem:[#allocation5 + $0x18] sm:$0xff]
        %v244 = vld [vmem:[%s2] sm:$0x1]
        %v246 = vlaneseq
        %v247 = vshrl.u32 %v246, 7
        %v248 = vsub.s32 0, %v247
        %v249 = vrot.slane %v244, %v248
        %vm251 = vcmask 261120
        %v253 = vsel %vm251, %v232, 0
        %v256 = vsel %vm251, %v233, 0
        %v259 = vsel %vm251, %v234, 0
        %v262 = vsel %vm251, %v235, 0
        %v265 = vsel %vm251, %v236, 0
        %v268 = vsel %vm251, %v237, 0
        %v271 = vsel %vm251, %v238, 0
        %v274 = vsel %vm251, %v239, 0
        %v277 = vsel %vm251, %v240, 0
        %v280 = vsel %vm251, %v241, 0
        %v283 = vsel %vm251, %v242, 0
        %v286 = vsel %vm251, %v243, 0
        %288 = vmatprep.subr.mxu0 0.0
        %289 = vmatpush1.xpose.msra.mxu0 %v277
        %290 = vmatprep.subr.mxu0 0.0
        %291 = vmatpush1.xpose.msra.mxu0 %v280
        %292 = vmatprep.subr.mxu0 0.0
        %293 = vmatpush1.xpose.msra.mxu0 %v283
        %294 = vmatprep.subr.mxu0 0.0
        %295 = vmatpush1.xpose.msra.mxu0 %v286
        %296 = vmatprep.subr.mxu0 0.0
        %297 = vmatpush1.xpose.msra.mxu0 0.0
        %298 = vmatprep.subr.mxu0 0.0
        %299 = vmatpush1.xpose.msra.mxu0 0.0
        %300 = vmatprep.subr.mxu0 0.0
        %301 = vmatpush1.xpose.msra.mxu0 0.0
        %302 = vmatprep.subr.mxu0 0.0
        %303 = vmatpush1.xpose.msra.mxu0 0.0
        %304 = vmatprep.subr.mxu0 0.0
        %305 = vmatpush1.xpose.msra.mxu0 0.0
        %306 = vmatprep.subr.mxu0 0.0
        %307 = vmatpush1.xpose.msra.mxu0 0.0
        %308 = vmatprep.subr.mxu0 0.0
        %309 = vmatpush1.xpose.msra.mxu0 0.0
        %310 = vmatprep.subr.mxu0 0.0
        %311 = vmatpush1.xpose.msra.mxu0 0.0
        %312 = vmatprep.subr.mxu0 0.0
        %313 = vmatpush1.xpose.msra.mxu0 0.0
        %314 = vmatprep.subr.mxu0 0.0
        %315 = vmatpush1.xpose.msra.mxu0 0.0
        %316 = vmatprep.subr.mxu0 0.0
        %317 = vmatpush1.xpose.msra.mxu0 0.0
        %318 = vmatprep.subr.mxu0 0.0
        %319 = vmatpush1.xpose.msra.mxu0 0.0
        %320 = vmatprep.subr.mxu0 0.0
        %321 = vmatpush1.xpose.msra.mxu0 0.0
        %322 = vmatprep.subr.mxu0 0.0
        %323 = vmatpush1.xpose.msra.mxu0 0.0
        %324 = vmatprep.subr.mxu0 0.0
        %325 = vmatpush1.xpose.msra.mxu0 0.0
        %326 = vmatprep.subr.mxu0 0.0
        %327 = vmatpush1.xpose.msra.mxu0 0.0
        %328 = vmatprep.subr.mxu0 0.0
        %329 = vmatpush1.xpose.msra.mxu0 0.0
        %330 = vmatprep.subr.mxu0 0.0
        %331 = vmatpush1.xpose.msra.mxu0 0.0
        %332 = vmatprep.subr.mxu0 0.0
        %333 = vmatpush1.xpose.msra.mxu0 0.0
        %334 = vmatprep.subr.mxu0 0.0
        %335 = vmatpush1.xpose.msra.mxu0 0.0
        %336 = vmatprep.subr.mxu0 0.0
        %337 = vmatpush1.xpose.msra.mxu0 0.0
        %338 = vmatprep.subr.mxu0 0.0
        %339 = vmatpush1.xpose.msra.mxu0 0.0
        %340 = vmatprep.subr.mxu0 0.0
        %341 = vmatpush1.xpose.msra.mxu0 0.0
        %342 = vmatprep.subr.mxu0 0.0
        %343 = vmatpush1.xpose.msra.mxu0 0.0
        %344 = vmatprep.subr.mxu0 0.0
        %345 = vmatpush1.xpose.msra.mxu0 0.0
        %346 = vmatprep.subr.mxu0 0.0
        %347 = vmatpush1.xpose.msra.mxu0 0.0
        %348 = vmatprep.subr.mxu0 0.0
        %349 = vmatpush1.xpose.msra.mxu0 0.0
        %350 = vmatprep.subr.mxu0 0.0
        %351 = vmatpush1.xpose.msra.mxu0 0.0
        %352 = vmatprep.mubr.f32.mxu0 0.0
        %353 = vmatmul.mubr.f32.gmra.mrb[0].mxu0 %v253
        %v354 = vpop.f32.mrb[0].mxu0
        %v355 = vadd.f32 %v249, %v354
        %v356 = vpop.f32.mrb[0].mxu0
        %357 = vmatprep.mubr.f32.mxu0 0.0
        %358 = vmatmul.mubr.f32.gmra.mrb[0].mxu0 %v256
        %v359 = vpop.f32.mrb[0].mxu0
        %v360 = vadd.f32 %v249, %v359
        %v361 = vpop.f32.mrb[0].mxu0
        %362 = vmatprep.mubr.f32.mxu0 0.0
        %363 = vmatmul.mubr.f32.gmra.mrb[0].mxu0 %v259
        %v364 = vpop.f32.mrb[0].mxu0
        %v365 = vadd.f32 %v249, %v364
        %v366 = vpop.f32.mrb[0].mxu0
        %367 = vmatprep.mubr.f32.mxu0 0.0
        %368 = vmatmul.mubr.f32.gmra.mrb[0].mxu0 %v262
        %v369 = vpop.f32.mrb[0].mxu0
        %v370 = vadd.f32 %v249, %v369
        %v371 = vpop.f32.mrb[0].mxu0
        %372 = vmatprep.mubr.f32.mxu0 0.0
        %373 = vmatmul.mubr.f32.gmra.mrb[0].mxu0 %v265
        %v374 = vpop.f32.mrb[0].mxu0
        %v375 = vadd.f32 %v249, %v374
        %v376 = vpop.f32.mrb[0].mxu0
        %377 = vmatprep.mubr.f32.mxu0 0.0
        %378 = vmatmul.mubr.f32.gmra.mrb[0].mxu0 %v268
        %v379 = vpop.f32.mrb[0].mxu0
        %v380 = vadd.f32 %v249, %v379
        %v381 = vpop.f32.mrb[0].mxu0
        %382 = vmatprep.mubr.f32.mxu0 0.0
        %383 = vmatmul.mubr.f32.gmra.mrb[0].mxu0 %v271
        %v384 = vpop.f32.mrb[0].mxu0
        %v385 = vadd.f32 %v249, %v384
        %v386 = vpop.f32.mrb[0].mxu0
        %387 = vmatprep.mubr.f32.mxu0 0.0
        %388 = vmatmul.mubr.f32.gmra.mrb[0].mxu0 %v274
        %v389 = vpop.f32.mrb[0].mxu0
        %v390 = vadd.f32 %v249, %v389
        %v391 = vpop.f32.mrb[0].mxu0
        %392 = vdwg.mxu0
        %v393 = vtanh.pop %v355
        %v394 = vtanh.pop %v360
        %v395 = vtanh.pop %v365
        %v396 = vtanh.pop %v370
        %v397 = vtanh.pop %v375
        %v398 = vtanh.pop %v380
        %v399 = vtanh.pop %v385
        %v400 = vtanh.pop %v390
        %v401 = vld [vmem:[%s3] sm:$0x1]
        %v403 = vlaneseq
        %v404 = vshrl.u32 %v403, 7
        %v405 = vsub.s32 0, %v404
        %v406 = vrot.slane %v401, %v405
        %v408 = vmul.f32 %v393, %v406
        %v409 = vmul.f32 %v394, %v406
        %v410 = vmul.f32 %v395, %v406
        %v411 = vmul.f32 %v396, %v406
        %v412 = vmul.f32 %v397, %v406
        %v413 = vmul.f32 %v398, %v406
        %v414 = vmul.f32 %v399, %v406
        %v415 = vmul.f32 %v400, %v406
        %v416 = vsel %vm251, %v408, 0.0
        %417 = vadd.xlane.f32.xlu0 %v416
        %v418 = vpop.xlane.xlu0 %417
        %v419 = vsel %vm251, %v409, 0.0
        %420 = vadd.xlane.f32.xlu0 %v419
        %v421 = vpop.xlane.xlu0 %420
        %v422 = vsel %vm251, %v410, 0.0
        %423 = vadd.xlane.f32.xlu0 %v422
        %v424 = vpop.xlane.xlu0 %423
        %v425 = vsel %vm251, %v411, 0.0
        %426 = vadd.xlane.f32.xlu0 %v425
        %v427 = vpop.xlane.xlu0 %426
        %v428 = vsel %vm251, %v412, 0.0
        %429 = vadd.xlane.f32.xlu0 %v428
        %v430 = vpop.xlane.xlu0 %429
        %v431 = vsel %vm251, %v413, 0.0
        %432 = vadd.xlane.f32.xlu0 %v431
        %v433 = vpop.xlane.xlu0 %432
        %v434 = vsel %vm251, %v414, 0.0
        %435 = vadd.xlane.f32.xlu0 %v434
        %v436 = vpop.xlane.xlu0 %435
        %v437 = vsel %vm251, %v415, 0.0
        %438 = vadd.xlane.f32.xlu0 %v437
        %v439 = vpop.xlane.xlu0 %438
        %v448 = vlaneseq
        %v449 = vand.u32 %v448, 127
        %v450 = vlaneseq
        %v451 = vshrl.u32 %v450, 7
        %v452 = vsub.s32 %v449, %v451
        %v453 = vrot.slane %v418, %v452
        %v454 = vlaneseq
        %v455 = vshrl.u32 %v454, 7
        %v456 = vsub.s32 %v449, %v455
        %v457 = vrot.slane %v421, %v456
        %v458 = vlaneseq
        %v459 = vshrl.u32 %v458, 7
        %v460 = vsub.s32 %v449, %v459
        %v461 = vrot.slane %v424, %v460
        %v462 = vlaneseq
        %v463 = vshrl.u32 %v462, 7
        %v464 = vsub.s32 %v449, %v463
        %v465 = vrot.slane %v427, %v464
        %v466 = vlaneseq
        %v467 = vshrl.u32 %v466, 7
        %v468 = vsub.s32 %v449, %v467
        %v469 = vrot.slane %v430, %v468
        %v470 = vlaneseq
        %v471 = vshrl.u32 %v470, 7
        %v472 = vsub.s32 %v449, %v471
        %v473 = vrot.slane %v433, %v472
        %v474 = vlaneseq
        %v475 = vshrl.u32 %v474, 7
        %v476 = vsub.s32 %v449, %v475
        %v477 = vrot.slane %v436, %v476
        %v478 = vlaneseq
        %v479 = vshrl.u32 %v478, 7
        %v480 = vsub.s32 %v449, %v479
        %v481 = vrot.slane %v439, %v480
        %vm482 = vcmask 1041409
        %v483 = vsel %vm482, %v457, %v453
        %vm484 = vcmask 1042434
        %v485 = vsel %vm484, %v461, %v483
        %vm486 = vcmask 1043459
        %v487 = vsel %vm486, %v465, %v485
        %vm488 = vcmask 1044484
        %v489 = vsel %vm488, %v469, %v487
        %vm490 = vcmask 1045509
        %v491 = vsel %vm490, %v473, %v489
        %vm492 = vcmask 1046534
        %v493 = vsel %vm492, %v477, %v491
        %vm494 = vcmask 1047559
        %v495 = vsel %vm494, %v481, %v493
        %vm497 = vcmask 64512
        %v498 = vsel %vm497, %v495, -inf
        %499 = vmax.xlane.f32.xlu0 %v498
        %v500 = vpop.xlane.xlu0 %499
        %v502 = vlaneseq
        %v503 = vshrl.u32 %v502, 7
        %v504 = vsub.s32 0, %v503
        %v505 = vrot.slane %v500, %v504
        %v506 = vlaneseq
        %v507 = vshrl.u32 %v506, 7
        %v508 = vsub.s32 1, %v507
        %v509 = vrot.slane %v500, %v508
        %v510 = vlaneseq
        %v511 = vshrl.u32 %v510, 7
        %v512 = vsub.s32 2, %v511
        %v513 = vrot.slane %v500, %v512
        %v514 = vlaneseq
        %v515 = vshrl.u32 %v514, 7
        %v516 = vsub.s32 3, %v515
        %v517 = vrot.slane %v500, %v516
        %v518 = vlaneseq
        %v519 = vshrl.u32 %v518, 7
        %v520 = vsub.s32 4, %v519
        %v521 = vrot.slane %v500, %v520
        %v522 = vlaneseq
        %v523 = vshrl.u32 %v522, 7
        %v524 = vsub.s32 5, %v523
        %v525 = vrot.slane %v500, %v524
        %v526 = vlaneseq
        %v527 = vshrl.u32 %v526, 7
        %v528 = vsub.s32 6, %v527
        %v529 = vrot.slane %v500, %v528
        %v530 = vlaneseq
        %v531 = vshrl.u32 %v530, 7
        %v532 = vsub.s32 7, %v531
        %v533 = vrot.slane %v500, %v532
        %v542 = vsub.f32 %v418, %v505
        %v543 = vsub.f32 %v421, %v509
        %v544 = vsub.f32 %v424, %v513
        %v545 = vsub.f32 %v427, %v517
        %v546 = vsub.f32 %v430, %v521
        %v547 = vsub.f32 %v433, %v525
        %v548 = vsub.f32 %v436, %v529
        %v549 = vsub.f32 %v439, %v533
        %v550 = vmul.f32 %v542, 1.442695
        %v551 = vpow.pop %v550
        %v552 = vmul.f32 %v543, 1.442695
        %v553 = vpow.pop %v552
        %v554 = vmul.f32 %v544, 1.442695
        %v555 = vpow.pop %v554
        %v556 = vmul.f32 %v545, 1.442695
        %v557 = vpow.pop %v556
        %v558 = vmul.f32 %v546, 1.442695
        %v559 = vpow.pop %v558
        %v560 = vmul.f32 %v547, 1.442695
        %v561 = vpow.pop %v560
        %v562 = vmul.f32 %v548, 1.442695
        %v563 = vpow.pop %v562
        %v564 = vmul.f32 %v549, 1.442695
        %v565 = vpow.pop %v564
        %574 = vset.pattern.permute.xlu0 0
        %575 = vperm.xlu0 %574, %v551
        %v576 = vpop.permute.xlu0 %575
        %577 = vset.pattern.permute.xlu0 0
        %578 = vperm.xlu0 %577, %v553
        %v579 = vpop.permute.xlu0 %578
        %580 = vset.pattern.permute.xlu0 0
        %581 = vperm.xlu0 %580, %v555
        %v582 = vpop.permute.xlu0 %581
        %583 = vset.pattern.permute.xlu0 0
        %584 = vperm.xlu0 %583, %v557
        %v585 = vpop.permute.xlu0 %584
        %586 = vset.pattern.permute.xlu0 0
        %587 = vperm.xlu0 %586, %v559
        %v588 = vpop.permute.xlu0 %587
        %589 = vset.pattern.permute.xlu0 0
        %590 = vperm.xlu0 %589, %v561
        %v591 = vpop.permute.xlu0 %590
        %592 = vset.pattern.permute.xlu0 0
        %593 = vperm.xlu0 %592, %v563
        %v594 = vpop.permute.xlu0 %593
        %595 = vset.pattern.permute.xlu0 0
        %596 = vperm.xlu0 %595, %v565
        %v597 = vpop.permute.xlu0 %596
        %v598 = vlaneseq
        %v599 = vshrl.u32 %v598, 7
        %v600 = vsub.s32 %v449, %v599
        %v601 = vrot.slane %v576, %v600
        %v602 = vlaneseq
        %v603 = vshrl.u32 %v602, 7
        %v604 = vsub.s32 %v449, %v603
        %v605 = vrot.slane %v579, %v604
        %v606 = vlaneseq
        %v607 = vshrl.u32 %v606, 7
        %v608 = vsub.s32 %v449, %v607
        %v609 = vrot.slane %v582, %v608
        %v610 = vlaneseq
        %v611 = vshrl.u32 %v610, 7
        %v612 = vsub.s32 %v449, %v611
        %v613 = vrot.slane %v585, %v612
        %v614 = vlaneseq
        %v615 = vshrl.u32 %v614, 7
        %v616 = vsub.s32 %v449, %v615
        %v617 = vrot.slane %v588, %v616
        %v618 = vlaneseq
        %v619 = vshrl.u32 %v618, 7
        %v620 = vsub.s32 %v449, %v619
        %v621 = vrot.slane %v591, %v620
        %v622 = vlaneseq
        %v623 = vshrl.u32 %v622, 7
        %v624 = vsub.s32 %v449, %v623
        %v625 = vrot.slane %v594, %v624
        %v626 = vlaneseq
        %v627 = vshrl.u32 %v626, 7
        %v628 = vsub.s32 %v449, %v627
        %v629 = vrot.slane %v597, %v628
        %v630 = vsel %vm482, %v605, %v601
        %v631 = vsel %vm484, %v609, %v630
        %v632 = vsel %vm486, %v613, %v631
        %v633 = vsel %vm488, %v617, %v632
        %v634 = vsel %vm490, %v621, %v633
        %v635 = vsel %vm492, %v625, %v634
        %v636 = vsel %vm494, %v629, %v635
        %v638 = vsel %vm497, %v636, 0.0
        %639 = vadd.xlane.f32.xlu0 %v638
        %v640 = vpop.xlane.xlu0 %639
        %v641 = vrcp.pop %v640
        %v642 = vmul.f32 %v640, %v641
        %v643 = vsub.f32 2.0, %v642
        %v644 = vmul.f32 %v641, %v643
        %v646 = vlaneseq
        %v647 = vshrl.u32 %v646, 7
        %v648 = vsub.s32 0, %v647
        %v649 = vrot.slane %v644, %v648
        %v650 = vlaneseq
        %v651 = vshrl.u32 %v650, 7
        %v652 = vsub.s32 1, %v651
        %v653 = vrot.slane %v644, %v652
        %v654 = vlaneseq
        %v655 = vshrl.u32 %v654, 7
        %v656 = vsub.s32 2, %v655
        %v657 = vrot.slane %v644, %v656
        %v658 = vlaneseq
        %v659 = vshrl.u32 %v658, 7
        %v660 = vsub.s32 3, %v659
        %v661 = vrot.slane %v644, %v660
        %v662 = vlaneseq
        %v663 = vshrl.u32 %v662, 7
        %v664 = vsub.s32 4, %v663
        %v665 = vrot.slane %v644, %v664
        %v666 = vlaneseq
        %v667 = vshrl.u32 %v666, 7
        %v668 = vsub.s32 5, %v667
        %v669 = vrot.slane %v644, %v668
        %v670 = vlaneseq
        %v671 = vshrl.u32 %v670, 7
        %v672 = vsub.s32 6, %v671
        %v673 = vrot.slane %v644, %v672
        %v674 = vlaneseq
        %v675 = vshrl.u32 %v674, 7
        %v676 = vsub.s32 7, %v675
        %v677 = vrot.slane %v644, %v676
        %v686 = vmul.f32 %v551, %v649
        %v687 = vmul.f32 %v553, %v653
        %v688 = vmul.f32 %v555, %v657
        %v689 = vmul.f32 %v557, %v661
        %v690 = vmul.f32 %v559, %v665
        %v691 = vmul.f32 %v561, %v669
        %v692 = vmul.f32 %v563, %v673
        %v693 = vmul.f32 %v565, %v677
        %695 = vset.pattern.permute.xlu0 0
        %696 = vperm.xlu0 %695, %v686
        %v697 = vpop.permute.xlu0 %696
        %700 = vset.pattern.permute.xlu0 0
        %701 = vperm.xlu0 %700, %v687
        %v702 = vpop.permute.xlu0 %701
        %705 = vset.pattern.permute.xlu0 0
        %706 = vperm.xlu0 %705, %v688
        %v707 = vpop.permute.xlu0 %706
        %710 = vset.pattern.permute.xlu0 0
        %711 = vperm.xlu0 %710, %v689
        %v712 = vpop.permute.xlu0 %711
        %715 = vset.pattern.permute.xlu0 0
        %716 = vperm.xlu0 %715, %v690
        %v717 = vpop.permute.xlu0 %716
        %720 = vset.pattern.permute.xlu0 0
        %721 = vperm.xlu0 %720, %v691
        %v722 = vpop.permute.xlu0 %721
        %725 = vset.pattern.permute.xlu0 0
        %726 = vperm.xlu0 %725, %v692
        %v727 = vpop.permute.xlu0 %726
        %730 = vset.pattern.permute.xlu0 0
        %731 = vperm.xlu0 %730, %v693
        %v732 = vpop.permute.xlu0 %731
        %v734 = vmul.f32 %v232, %v697
        %v735 = vmul.f32 %v233, %v702
        %v736 = vmul.f32 %v234, %v707
        %v737 = vmul.f32 %v235, %v712
        %v738 = vmul.f32 %v236, %v717
        %v739 = vmul.f32 %v237, %v722
        %v740 = vmul.f32 %v238, %v727
        %v741 = vmul.f32 %v239, %v732
        %v742 = vsel %vm251, %v734, 0.0
        %v743 = vrot.slane %v742, 4
        %v744 = vadd.f32 %v742, %v743
        %v745 = vrot.slane %v744, 2
        %v746 = vadd.f32 %v744, %v745
        %v747 = vrot.slane %v746, 1
        %v748 = vadd.f32 %v746, %v747
        %v749 = vsel %vm251, %v735, 0.0
        %v750 = vrot.slane %v749, 4
        %v751 = vadd.f32 %v749, %v750
        %v752 = vrot.slane %v751, 2
        %v753 = vadd.f32 %v751, %v752
        %v754 = vrot.slane %v753, 1
        %v755 = vadd.f32 %v753, %v754
        %v756 = vsel %vm251, %v736, 0.0
        %v757 = vrot.slane %v756, 4
        %v758 = vadd.f32 %v756, %v757
        %v759 = vrot.slane %v758, 2
        %v760 = vadd.f32 %v758, %v759
        %v761 = vrot.slane %v760, 1
        %v762 = vadd.f32 %v760, %v761
        %v763 = vsel %vm251, %v737, 0.0
        %v764 = vrot.slane %v763, 4
        %v765 = vadd.f32 %v763, %v764
        %v766 = vrot.slane %v765, 2
        %v767 = vadd.f32 %v765, %v766
        %v768 = vrot.slane %v767, 1
        %v769 = vadd.f32 %v767, %v768
        %v770 = vsel %vm251, %v738, 0.0
        %v771 = vrot.slane %v770, 4
        %v772 = vadd.f32 %v770, %v771
        %v773 = vrot.slane %v772, 2
        %v774 = vadd.f32 %v772, %v773
        %v775 = vrot.slane %v774, 1
        %v776 = vadd.f32 %v774, %v775
        %v777 = vsel %vm251, %v739, 0.0
        %v778 = vrot.slane %v777, 4
        %v779 = vadd.f32 %v777, %v778
        %v780 = vrot.slane %v779, 2
        %v781 = vadd.f32 %v779, %v780
        %v782 = vrot.slane %v781, 1
        %v783 = vadd.f32 %v781, %v782
        %v784 = vsel %vm251, %v740, 0.0
        %v785 = vrot.slane %v784, 4
        %v786 = vadd.f32 %v784, %v785
        %v787 = vrot.slane %v786, 2
        %v788 = vadd.f32 %v786, %v787
        %v789 = vrot.slane %v788, 1
        %v790 = vadd.f32 %v788, %v789
        %v791 = vsel %vm251, %v741, 0.0
        %v792 = vrot.slane %v791, 4
        %v793 = vadd.f32 %v791, %v792
        %v794 = vrot.slane %v793, 2
        %v795 = vadd.f32 %v793, %v794
        %v796 = vrot.slane %v795, 1
        %v797 = vadd.f32 %v795, %v796
        %v806 = vsel %vm482, %v755, %v748
        %v807 = vsel %vm484, %v762, %v806
        %v808 = vsel %vm486, %v769, %v807
        %v809 = vsel %vm488, %v776, %v808
        %v810 = vsel %vm490, %v783, %v809
        %v811 = vsel %vm492, %v790, %v810
        %v812 = vsel %vm494, %v797, %v811
        %814 = vst.msk [vmem:[%s230] sm:$0xff] %vm251, %v812
        %s815 = sand.u32 %s119, 1
        %s816 = scalar_lea.sflag [#allocation4], %s815
        %s817 = sand.u32 %s119, 1
        %s818 = smul.addr %s817, 8
        %s819 = scalar_lea.vmem [#allocation7], %s818
        // Predicated region
        $region45: #{tpu_custom_call.1} parent=35 // pred_check
          %p820 = pneg %p129
        $region46: #{tpu_custom_call.1} parent=35 // pred_check_branch
          %822 = sbr.rel (%p820) target = $region48
        $region47: #{tpu_custom_call.1} parent=35 // pred_region
          %s824 = ssub.s32 128, 128
          %825 = vsyncadd %s816, %s824
          %s826 = smul.addr %s22, 128
          %s827 = scalar_lea.hbm %s4, %s826
          %s829 = sshll.u32 %s819, 4
          %s830 = int_to_ptr.vmem [resolvable:$true] %s829
          %832 = dma.vmem_to_hbm [thread:$0]  %s830, 128, %s827, %s816
        $region48: #{tpu_custom_call.1} parent=35 // pred_fallthru
          _
      $region36: #{tpu_custom_call.1} parent=5 // pred_fallthru
        _
      %p833 = scmp.le.s32.totalorder 2, %s17
      // Predicated region
      $region49: #{tpu_custom_call.1} parent=5 // pred_check
        %p834 = pneg %p833
      $region50: #{tpu_custom_call.1} parent=5 // pred_check_branch
        %836 = sbr.rel (%p834) target = $region52
      $region51: #{tpu_custom_call.1} parent=5 // pred_region
        %s837 = ssub.s32 %s17, 2
        // Predicated region
        $region53: #{tpu_custom_call.1} parent=51 // pred_check
          %p838 = pneg %p135
        $region54: #{tpu_custom_call.1} parent=51 // pred_check_branch
          %840 = sbr.rel (%p838) target = $region56
        $region55: #{tpu_custom_call.1} parent=51 // pred_region
          %s841 = sand.u32 %s120, 1
          %s842 = scalar_lea.sflag [#allocation4], %s841
          %s843 = sand.u32 %s120, 1
          %s844 = smul.addr %s843, 8
          %s845 = scalar_lea.vmem [#allocation7], %s844
          %846 = dma.done %s842, 128
        $region56: #{tpu_custom_call.1} parent=51 // pred_fallthru
          _
      $region52: #{tpu_custom_call.1} parent=5 // pred_fallthru
        _
    $region6: #{tpu_custom_call.1} parent=1 // loop_footer
      %s21 = sadd.s32 1, %s17
    $region7: #{tpu_custom_call.1} parent=1 // loop_footer_branch
      %16 = sbr.rel target = $region3
    $region8: #{tpu_custom_call.1} parent=1 // loop_exit
      _
    %847 = vsyncpa [#allocation3], 1
    %s848 = scalar_lea.sflag [#allocation3], 1
    %849 = vsyncpa %s848, 1
    %850 = vsyncpa [#allocation6], 1
    %851 = vsyncpa [#allocation4], 1
    %s852 = scalar_lea.sflag [#allocation4], 1
    %853 = vsyncpa %s852, 1

</llo_original>
